<compile_context>
chip_gen: v6e
topology: v6e:2x2x1
jax: 0.10.0
libtpu: 0.0.40
codegen_flags: <defaults>
</compile_context>

<pallas_src>
import jax
import jax.numpy as jnp
from jax.experimental import pallas as pl
from jax.experimental.pallas import tpu as pltpu

# TODO(synk): the `base_model` (ViT backbone) is an externally supplied module with no
# definition in this file; only the classifier head is implemented as a Pallas kernel.

D_FEATURES = 768
N_CLASSES = 10
C_PAD = 128          # lane-dense padded class dimension (one full lane width)
DEFAULT_TM = 1024    # batch tile (rows per grid step)


def _round_up(x, m):
    return ((x + m - 1) // m) * m


def classifier_kernel(x_ref, w_ref, b_ref, o_ref):
    # In-register bf16 cast of the f32 feature tile (no extra HBM traffic), then
    # Linear: logits = x(bf16) @ W(bf16) with f32 accumulation on the MXU.
    x = x_ref[...].astype(jnp.bfloat16)
    logits = jnp.dot(x, w_ref[...], preferred_element_type=jnp.float32)
    # Bias is f32 [1, C_PAD]; padded columns carry -inf so they vanish in softmax.
    logits = logits + b_ref[...]
    # Numerically-stable softmax over the class axis (PyTorch dim=1). Exact divide.
    m = jnp.max(logits, axis=1, keepdims=True)           # finite (real classes)
    e = jnp.exp(logits - m)                               # padded cols -> exp(-inf)=0
    denom = jnp.sum(e, axis=1, keepdims=True)
    o_ref[...] = (e / denom).astype(o_ref.dtype)          # bf16 lane-dense store


def prepare_params(w, b):
    """One-time (load-time) padding/cast of the classifier parameters.

    w: [768, 10] f32, b: [1, 10] f32  ->  (w_p [768,128] bf16, b_p [1,128] f32)
    """
    w_p = jnp.zeros((D_FEATURES, C_PAD), jnp.bfloat16)
    w_p = w_p.at[:, :N_CLASSES].set(w.astype(jnp.bfloat16))
    b_p = jnp.full((1, C_PAD), -jnp.inf, jnp.float32)
    b_p = b_p.at[:, :N_CLASSES].set(b.astype(jnp.float32))
    return w_p, b_p


def model_head(x, w_p, b_p, *, tm=DEFAULT_TM):
    """x: [B, 768] f32 features from the base model; w_p/b_p from prepare_params."""
    B = x.shape[0]

    # Clamp tile for tiny batches; round to 16 for bf16 sublane packing of the output.
    tm = min(tm, _round_up(B, 16))
    grid = (pl.cdiv(B, tm),)   # partial boundary block handled by Pallas (no jnp.pad)

    # Double-buffered x (f32) + out (bf16) tiles, resident W/bias, plus headroom.
    working_set = (2 * tm * D_FEATURES * 4        # x tiles
                   + 2 * tm * C_PAD * 2           # out tiles
                   + 2 * D_FEATURES * C_PAD * 2   # W
                   + 2 * C_PAD * 4)               # bias
    vmem_limit = min(max(working_set + (4 << 20), 16 << 20), 48 << 20)

    out = pl.pallas_call(
        classifier_kernel,
        out_shape=jax.ShapeDtypeStruct((B, C_PAD), jnp.bfloat16),
        grid_spec=pltpu.PrefetchScalarGridSpec(
            num_scalar_prefetch=0,
            grid=grid,
            in_specs=[
                pl.BlockSpec((tm, D_FEATURES), lambda i: (i, 0)),       # x tile
                pl.BlockSpec((D_FEATURES, C_PAD), lambda i: (0, 0)),    # resident W
                pl.BlockSpec((1, C_PAD), lambda i: (0, 0)),             # resident bias
            ],
            out_specs=pl.BlockSpec((tm, C_PAD), lambda i: (i, 0)),
        ),
        compiler_params=pltpu.CompilerParams(
            # Batch axis is independent -> "parallel" (megacore sharding on v7x;
            # harmless on v5e/v6e).  If a v7x trace shows it running on one TC,
            # switch to pltpu.CORE_PARALLEL.
            dimension_semantics=("parallel",),
            vmem_limit_bytes=vmem_limit,
        ),
    )(x, w_p, b_p)

    # Keep this slice: boundary-block rows beyond B are undefined, and columns
    # beyond N_CLASSES are lane padding.
    return out[:B, :N_CLASSES]


def model_forward(features, padded_params):
    # Dropout(p=0.0) is identity; classifier head runs in the Pallas kernel.
    w_p, b_p = padded_params
    return model_head(features, w_p, b_p)


def init_params(key):
    kw, kb = jax.random.split(key)
    # Deterministic synthetic init mimicking nn.Linear(768, 10) shapes.
    bound = 1.0 / (D_FEATURES ** 0.5)
    w = jax.random.uniform(kw, (D_FEATURES, N_CLASSES), jnp.float32, -bound, bound)
    b = jax.random.uniform(kb, (1, N_CLASSES), jnp.float32, -bound, bound)
    return {"w": w, "b": b}


if __name__ == "__main__":
    key = jax.random.PRNGKey(0)
    k_feat, k_param = jax.random.split(key)

    B = 2  # small batch
    # Features the base ViT would produce (its pooled 768-dim output).
    features = jax.random.normal(k_feat, (B, D_FEATURES), jnp.float32)
    params = init_params(k_param)
    padded_params = prepare_params(params["w"], params["b"])  # hoisted, load-time

    probs = model_forward(features, padded_params)
    probs = jax.block_until_ready(probs)
    probs_f32 = probs.astype(jnp.float32)

    # Reference with the same bf16 weight/feature quantization (f32 accumulate).
    x_q = features.astype(jnp.bfloat16).astype(jnp.float32)
    w_q = params["w"].astype(jnp.bfloat16).astype(jnp.float32)
    ref = jax.nn.softmax(x_q @ w_q + params["b"], axis=1)
    # Pure f32 reference (looser: bf16 quantization + bf16 output rounding).
    ref_f32 = jax.nn.softmax(features @ params["w"] + params["b"], axis=1)

    assert probs.shape == (B, N_CLASSES)
    # Tolerances account for the bf16 output store (~2^-9 abs rounding on values <= 1).
    assert jnp.allclose(probs_f32, ref, atol=5e-3, rtol=0)
    assert jnp.allclose(probs_f32, ref_f32, atol=2e-2, rtol=0)
    assert jnp.allclose(jnp.sum(probs_f32, axis=1), 1.0, atol=5e-3)

    print("KERNEL_OK")
</pallas_src>

<mosaic_0001>
module attributes {stable_mosaic.version = 11 : i64} {
  func.func @classifier_kernel(%arg0: i32, %arg1: memref<16x768xf32, #tpu.memory_space<vmem>>, %arg2: memref<768x128xbf16, #tpu.memory_space<vmem>>, %arg3: memref<1x128xf32, #tpu.memory_space<vmem>>, %arg4: memref<16x128xbf16, #tpu.memory_space<vmem>>) attributes {dimension_semantics = [#tpu.dimension_semantics<parallel>], iteration_bounds = array<i64: 1>, scalar_prefetch = 0 : i64, scratch_operands = 0 : i64, tpu.core_type = #tpu.core_type<tc>, window_params = [{transform_indices = @transform_0, window_bounds = array<i64: 16, 768>}, {pipeline_mode = #tpu.pipeline_mode<synchronous>, transform_indices = @transform_1, window_bounds = array<i64: 768, 128>}, {pipeline_mode = #tpu.pipeline_mode<synchronous>, transform_indices = @transform_2, window_bounds = array<i64: 1, 128>}, {transform_indices = @transform_3, window_bounds = array<i64: 16, 128>}]} {
    %c0 = arith.constant 0 : index
    %c0_0 = arith.constant 0 : index
    %0 = vector.load %arg1[%c0, %c0_0] : memref<16x768xf32, #tpu.memory_space<vmem>>, vector<16x768xf32>
    %1 = arith.truncf %0 : vector<16x768xf32> to vector<16x768xbf16>
    %c0_1 = arith.constant 0 : index
    %c0_2 = arith.constant 0 : index
    %2 = vector.load %arg2[%c0_1, %c0_2] : memref<768x128xbf16, #tpu.memory_space<vmem>>, vector<768x128xbf16>
    %cst = arith.constant dense<0.000000e+00> : vector<16x128xf32>
    %3 = tpu.matmul %1, %2, %cst {dimension_numbers = #tpu.dot_dimension_numbers<[1], [0], [0], [1], [0, 0, 1, 1], [], []>} : vector<16x768xbf16>, vector<768x128xbf16>, vector<16x128xf32> -> vector<16x128xf32>
    %c0_3 = arith.constant 0 : index
    %c0_4 = arith.constant 0 : index
    %4 = vector.load %arg3[%c0_3, %c0_4] : memref<1x128xf32, #tpu.memory_space<vmem>>, vector<1x128xf32>
    %5 = vector.broadcast %4 : vector<1x128xf32> to vector<16x128xf32>
    %6 = arith.addf %3, %5 : vector<16x128xf32>
    %cst_5 = arith.constant dense<0xFF800000> : vector<16xf32>
    %7 = vector.multi_reduction <maximumf>, %6, %cst_5 [1] : vector<16x128xf32> to vector<16xf32>
    %8 = vector.shape_cast %7 : vector<16xf32> to vector<16x1xf32>
    %9 = vector.broadcast %8 : vector<16x1xf32> to vector<16x128xf32>
    %10 = arith.subf %6, %9 : vector<16x128xf32>
    %11 = math.exp %10 : vector<16x128xf32>
    %cst_6 = arith.constant dense<0.000000e+00> : vector<16xf32>
    %12 = vector.multi_reduction <add>, %11, %cst_6 [1] : vector<16x128xf32> to vector<16xf32>
    %13 = vector.shape_cast %12 : vector<16xf32> to vector<16x1xf32>
    %14 = vector.broadcast %13 : vector<16x1xf32> to vector<16x128xf32>
    %15 = arith.divf %11, %14 : vector<16x128xf32>
    %16 = arith.truncf %15 : vector<16x128xf32> to vector<16x128xbf16>
    %c0_7 = arith.constant 0 : index
    %c0_8 = arith.constant 0 : index
    %17 = vector.load %arg4[%c0_7, %c0_8] : memref<16x128xbf16, #tpu.memory_space<vmem>>, vector<16x128xbf16>
    tpu.vector_store %arg4[%c0_7, %c0_8], %16 {strides = array<i32>} : memref<16x128xbf16, #tpu.memory_space<vmem>>, vector<16x128xbf16>,
    return
  }
  func.func @transform_0(%arg0: i32) -> (i32, i32) {
    %c0_i32 = arith.constant 0 : i32
    %c0_i32_0 = arith.constant 0 : i32
    return %arg0, %c0_i32 : i32, i32
  }
  func.func @transform_1(%arg0: i32) -> (i32, i32) {
    %c0_i32 = arith.constant 0 : i32
    %c0_i32_0 = arith.constant 0 : i32
    %c0_i32_1 = arith.constant 0 : i32
    return %c0_i32, %c0_i32_0 : i32, i32
  }
  func.func @transform_2(%arg0: i32) -> (i32, i32) {
    %c0_i32 = arith.constant 0 : i32
    %c0_i32_0 = arith.constant 0 : i32
    %c0_i32_1 = arith.constant 0 : i32
    return %c0_i32, %c0_i32_0 : i32, i32
  }
  func.func @transform_3(%arg0: i32) -> (i32, i32) {
    %c0_i32 = arith.constant 0 : i32
    %c0_i32_0 = arith.constant 0 : i32
    return %arg0, %c0_i32 : i32, i32
  }
}

</mosaic_0001>

<llo_original>
// kernel: tpu_custom_call.1
$region0: #{tpu_custom_call.1}
  #allocation0 [shape = 'u32[]', space=smem, size = 0x4, offset = 0x4, fixed_abs, tag = 'smem constant byte address 0x4 - core index']
  #allocation1 [shape = 'u32[144,128]{1,0:T(1,128)}', space=vmem, size = 0x12000, scoped, tag = 'internal scratch']
  %s0 = inlined_call_operand.hbm [shape: f32[2,768], index: 0, kind: input, shape index: {}]
  %s1 = inlined_call_operand.hbm [shape: bf16[768,128], index: 1, kind: input, shape index: {}]
  %s2 = inlined_call_operand.vmem [shape: f32[1,128], index: 2, kind: input, shape index: {}]
  %s3 = inlined_call_operand.hbm [shape: bf16[2,128], index: 3, kind: output, shape index: {}]
  %s4 = sld [smem:[#allocation0]]
  $region30: #{tpu_custom_call.1} parent=0
    _
  %s6 = ssub.s32 1, %s4
  %s7 = scalar_select 0, %s6, %s4
  $region1: #{tpu_custom_call.1} parent=0
    #allocation2 [shape = 'u8[49152]{0}', space=vmem, size = 0xc000, scoped, tag = 'input window, operand 0, single buffered']
    #allocation3 [shape = 's32[1]{0}', space=sflag, size = 0x4, scoped, tag = 'scoped memory for tpu_custom_call.1']
    #allocation4 [shape = 's32[1]{0}', space=sflag, size = 0x4, scoped, tag = 'scoped memory for tpu_custom_call.1']
    #allocation5 [shape = 'u8[196608]{0}', space=vmem, size = 0x30000, scoped, tag = 'input window, operand 1, single buffered']
    #allocation6 [shape = 's32[1]{0}', space=sflag, size = 0x4, scoped, tag = 'scoped memory for tpu_custom_call.1']
    #allocation7 [shape = 'u8[4096]{0}', space=vmem, size = 0x1000, scoped, tag = 'output window, operand 0, single buffered']
    %8 = vsyncpa [#allocation3], 0
    %9 = vsyncpa [#allocation6], 0
    %10 = vsyncpa [#allocation4], 0
    // Predicated region
    $region2: #{tpu_custom_call.1} parent=1 // pred_check
      _
    $region3: #{tpu_custom_call.1} parent=1 // pred_check_branch
      %12 = sbr.rel (0) target = $region5
    $region4: #{tpu_custom_call.1} parent=1 // pred_region
      %s14 = ssub.s32 1536, 192
      %15 = vsyncadd [#allocation3], %s14
      %s16 = sshll.u32 [#allocation2], 4
      %s17 = int_to_ptr.vmem [resolvable:$true] %s16
      %22 = dma.hbm_to_vmem [thread:$0]  %s0, 192, %s17, [#allocation3], 192, 192, 12
    $region5: #{tpu_custom_call.1} parent=1 // pred_fallthru
      _
    // Predicated region
    $region6: #{tpu_custom_call.1} parent=1 // pred_check
      _
    $region7: #{tpu_custom_call.1} parent=1 // pred_check_branch
      %24 = sbr.rel (0) target = $region9
    $region8: #{tpu_custom_call.1} parent=1 // pred_region
      %s26 = ssub.s32 6144, 6144
      %27 = vsyncadd [#allocation6], %s26
      %s28 = sshll.u32 [#allocation5], 4
      %s29 = int_to_ptr.vmem [resolvable:$true] %s28
      %34 = dma.hbm_to_vmem [thread:$0]  %s1, 6144, %s29, [#allocation6], 64, 64, 4
    $region9: #{tpu_custom_call.1} parent=1 // pred_fallthru
      _
    // Predicated region
    $region10: #{tpu_custom_call.1} parent=1 // pred_check
      _
    $region11: #{tpu_custom_call.1} parent=1 // pred_check_branch
      %36 = sbr.rel (0) target = $region13
    $region12: #{tpu_custom_call.1} parent=1 // pred_region
      _
    $region13: #{tpu_custom_call.1} parent=1 // pred_fallthru
      _
    // Predicated region
    $region14: #{tpu_custom_call.1} parent=1 // pred_check
      _
    $region15: #{tpu_custom_call.1} parent=1 // pred_check_branch
      %38 = sbr.rel (0) target = $region17
    $region16: #{tpu_custom_call.1} parent=1 // pred_region
      %39 = dma.done [#allocation3], 1536
    $region17: #{tpu_custom_call.1} parent=1 // pred_fallthru
      _
    // Predicated region
    $region18: #{tpu_custom_call.1} parent=1 // pred_check
      _
    $region19: #{tpu_custom_call.1} parent=1 // pred_check_branch
      %41 = sbr.rel (0) target = $region21
    $region20: #{tpu_custom_call.1} parent=1 // pred_region
      %42 = dma.done [#allocation6], 6144
    $region21: #{tpu_custom_call.1} parent=1 // pred_fallthru
      _
    %v44 = vld [vmem:[#allocation2] sm:$0xff]
    %v45 = vld [vmem:[#allocation2 + $0x8] sm:$0xf]
    %v46 = vld [vmem:[#allocation2 + $0xc] sm:$0xff]
    %v47 = vld [vmem:[#allocation2 + $0x14] sm:$0xf]
    %v48 = vld [vmem:[#allocation2 + $0x18] sm:$0xff]
    %v49 = vld [vmem:[#allocation2 + $0x20] sm:$0xf]
    %v50 = vld [vmem:[#allocation2 + $0x24] sm:$0xff]
    %v51 = vld [vmem:[#allocation2 + $0x2c] sm:$0xf]
    %v52 = vld [vmem:[#allocation2 + $0x30] sm:$0xff]
    %v53 = vld [vmem:[#allocation2 + $0x38] sm:$0xf]
    %v54 = vld [vmem:[#allocation2 + $0x3c] sm:$0xff]
    %v55 = vld [vmem:[#allocation2 + $0x44] sm:$0xf]
    %v56 = vld [vmem:[#allocation2 + $0x48] sm:$0xff]
    %v57 = vld [vmem:[#allocation2 + $0x50] sm:$0xf]
    %v58 = vld [vmem:[#allocation2 + $0x54] sm:$0xff]
    %v59 = vld [vmem:[#allocation2 + $0x5c] sm:$0xf]
    %v76 = vcombine.low %v44, %v46
    %v77 = vcombine.high %v44, %v46
    %v78 = vcombine.low %v48, %v50
    %v79 = vcombine.high %v48, %v50
    %v81 = vunpack.c.l.s4 1983009808
    %v82 = vunpack.c.0.s8 %v81
    %v83 = vlaneseq
    %v84 = vshrl.u32 %v83, 7
    %v85 = vsub.s32 %v82, %v84
    %v86 = vrot.slane %v76, %v85
    %v88 = vunpack.c.l.s4 1983009808
    %v89 = vunpack.c.0.s8 %v88
    %v90 = vlaneseq
    %v91 = vshrl.u32 %v90, 7
    %v92 = vsub.s32 %v89, %v91
    %v93 = vrot.slane %v77, %v92
    %v95 = vunpack.c.l.s4 1983009808
    %v96 = vunpack.c.0.s8 %v95
    %v97 = vlaneseq
    %v98 = vshrl.u32 %v97, 7
    %v99 = vsub.s32 %v96, %v98
    %v100 = vrot.slane %v78, %v99
    %v102 = vunpack.c.l.s4 1983009808
    %v103 = vunpack.c.0.s8 %v102
    %v104 = vlaneseq
    %v105 = vshrl.u32 %v104, 7
    %v106 = vsub.s32 %v103, %v105
    %v107 = vrot.slane %v79, %v106
    %v108 = vcombine.low %v86, %v100
    %v109 = vcombine.high %v86, %v100
    %v110 = vcombine.low %v93, %v107
    %v111 = vcombine.high %v93, %v107
    %v112 = vcombine.low %v45, %v47
    %v113 = vcombine.low %v49, %v51
    %v115 = vunpack.c.l.s4 1983009808
    %v116 = vunpack.c.0.s8 %v115
    %v117 = vlaneseq
    %v118 = vshrl.u32 %v117, 7
    %v119 = vsub.s32 %v116, %v118
    %v120 = vrot.slane %v112, %v119
    %v122 = vunpack.c.l.s4 1983009808
    %v123 = vunpack.c.0.s8 %v122
    %v124 = vlaneseq
    %v125 = vshrl.u32 %v124, 7
    %v126 = vsub.s32 %v123, %v125
    %v127 = vrot.slane %v113, %v126
    %v128 = vcombine.low %v120, %v127
    %v129 = vcombine.high %v120, %v127
    %v130 = vcombine.low %v52, %v54
    %v131 = vcombine.high %v52, %v54
    %v132 = vcombine.low %v56, %v58
    %v133 = vcombine.high %v56, %v58
    %v135 = vunpack.c.l.s4 1983009808
    %v136 = vunpack.c.0.s8 %v135
    %v137 = vlaneseq
    %v138 = vshrl.u32 %v137, 7
    %v139 = vsub.s32 %v136, %v138
    %v140 = vrot.slane %v130, %v139
    %v142 = vunpack.c.l.s4 1983009808
    %v143 = vunpack.c.0.s8 %v142
    %v144 = vlaneseq
    %v145 = vshrl.u32 %v144, 7
    %v146 = vsub.s32 %v143, %v145
    %v147 = vrot.slane %v131, %v146
    %v149 = vunpack.c.l.s4 1983009808
    %v150 = vunpack.c.0.s8 %v149
    %v151 = vlaneseq
    %v152 = vshrl.u32 %v151, 7
    %v153 = vsub.s32 %v150, %v152
    %v154 = vrot.slane %v132, %v153
    %v156 = vunpack.c.l.s4 1983009808
    %v157 = vunpack.c.0.s8 %v156
    %v158 = vlaneseq
    %v159 = vshrl.u32 %v158, 7
    %v160 = vsub.s32 %v157, %v159
    %v161 = vrot.slane %v133, %v160
    %v162 = vcombine.low %v140, %v154
    %v163 = vcombine.high %v140, %v154
    %v164 = vcombine.low %v147, %v161
    %v165 = vcombine.high %v147, %v161
    %v166 = vcombine.low %v53, %v55
    %v167 = vcombine.low %v57, %v59
    %v169 = vunpack.c.l.s4 1983009808
    %v170 = vunpack.c.0.s8 %v169
    %v171 = vlaneseq
    %v172 = vshrl.u32 %v171, 7
    %v173 = vsub.s32 %v170, %v172
    %v174 = vrot.slane %v166, %v173
    %v176 = vunpack.c.l.s4 1983009808
    %v177 = vunpack.c.0.s8 %v176
    %v178 = vlaneseq
    %v179 = vshrl.u32 %v178, 7
    %v180 = vsub.s32 %v177, %v179
    %v181 = vrot.slane %v167, %v180
    %v182 = vcombine.low %v174, %v181
    %v183 = vcombine.high %v174, %v181
    %v196 = vpack.c.bf16 %v162, %v108
    %v197 = vpack.c.bf16 %v163, %v109
    %v198 = vpack.c.bf16 %v164, %v110
    %v199 = vpack.c.bf16 %v165, %v111
    %v200 = vpack.c.bf16 %v182, %v128
    %v201 = vpack.c.bf16 %v183, %v129
    %v202 = vld [vmem:[#allocation5] sm:$0xf]
    %v203 = vld [vmem:[#allocation5 + $0x4] sm:$0xf]
    %v204 = vld [vmem:[#allocation5 + $0x8] sm:$0xf]
    %v205 = vld [vmem:[#allocation5 + $0xc] sm:$0xf]
    %v206 = vld [vmem:[#allocation5 + $0x10] sm:$0xf]
    %v207 = vld [vmem:[#allocation5 + $0x14] sm:$0xf]
    %v208 = vld [vmem:[#allocation5 + $0x18] sm:$0xf]
    %v209 = vld [vmem:[#allocation5 + $0x1c] sm:$0xf]
    %v210 = vld [vmem:[#allocation5 + $0x20] sm:$0xf]
    %v211 = vld [vmem:[#allocation5 + $0x24] sm:$0xf]
    %v212 = vld [vmem:[#allocation5 + $0x28] sm:$0xf]
    %v213 = vld [vmem:[#allocation5 + $0x2c] sm:$0xf]
    %v214 = vld [vmem:[#allocation5 + $0x30] sm:$0xf]
    %v215 = vld [vmem:[#allocation5 + $0x34] sm:$0xf]
    %v216 = vld [vmem:[#allocation5 + $0x38] sm:$0xf]
    %v217 = vld [vmem:[#allocation5 + $0x3c] sm:$0xf]
    %v218 = vld [vmem:[#allocation5 + $0x40] sm:$0xf]
    %v219 = vld [vmem:[#allocation5 + $0x44] sm:$0xf]
    %v220 = vld [vmem:[#allocation5 + $0x48] sm:$0xf]
    %v221 = vld [vmem:[#allocation5 + $0x4c] sm:$0xf]
    %v222 = vld [vmem:[#allocation5 + $0x50] sm:$0xf]
    %v223 = vld [vmem:[#allocation5 + $0x54] sm:$0xf]
    %v224 = vld [vmem:[#allocation5 + $0x58] sm:$0xf]
    %v225 = vld [vmem:[#allocation5 + $0x5c] sm:$0xf]
    %v226 = vld [vmem:[#allocation5 + $0x60] sm:$0xf]
    %v227 = vld [vmem:[#allocation5 + $0x64] sm:$0xf]
    %v228 = vld [vmem:[#allocation5 + $0x68] sm:$0xf]
    %v229 = vld [vmem:[#allocation5 + $0x6c] sm:$0xf]
    %v230 = vld [vmem:[#allocation5 + $0x70] sm:$0xf]
    %v231 = vld [vmem:[#allocation5 + $0x74] sm:$0xf]
    %v232 = vld [vmem:[#allocation5 + $0x78] sm:$0xf]
    %v233 = vld [vmem:[#allocation5 + $0x7c] sm:$0xf]
    %v234 = vld [vmem:[#allocation5 + $0x80] sm:$0xf]
    %v235 = vld [vmem:[#allocation5 + $0x84] sm:$0xf]
    %v236 = vld [vmem:[#allocation5 + $0x88] sm:$0xf]
    %v237 = vld [vmem:[#allocation5 + $0x8c] sm:$0xf]
    %v238 = vld [vmem:[#allocation5 + $0x90] sm:$0xf]
    %v239 = vld [vmem:[#allocation5 + $0x94] sm:$0xf]
    %v240 = vld [vmem:[#allocation5 + $0x98] sm:$0xf]
    %v241 = vld [vmem:[#allocation5 + $0x9c] sm:$0xf]
    %v242 = vld [vmem:[#allocation5 + $0xa0] sm:$0xf]
    %v243 = vld [vmem:[#allocation5 + $0xa4] sm:$0xf]
    %v244 = vld [vmem:[#allocation5 + $0xa8] sm:$0xf]
    %v245 = vld [vmem:[#allocation5 + $0xac] sm:$0xf]
    %v246 = vld [vmem:[#allocation5 + $0xb0] sm:$0xf]
    %v247 = vld [vmem:[#allocation5 + $0xb4] sm:$0xf]
    %v248 = vld [vmem:[#allocation5 + $0xb8] sm:$0xf]
    %v249 = vld [vmem:[#allocation5 + $0xbc] sm:$0xf]
    %v250 = vld [vmem:[#allocation5 + $0xc0] sm:$0xf]
    %v251 = vld [vmem:[#allocation5 + $0xc4] sm:$0xf]
    %v252 = vld [vmem:[#allocation5 + $0xc8] sm:$0xf]
    %v253 = vld [vmem:[#allocation5 + $0xcc] sm:$0xf]
    %v254 = vld [vmem:[#allocation5 + $0xd0] sm:$0xf]
    %v255 = vld [vmem:[#allocation5 + $0xd4] sm:$0xf]
    %v256 = vld [vmem:[#allocation5 + $0xd8] sm:$0xf]
    %v257 = vld [vmem:[#allocation5 + $0xdc] sm:$0xf]
    %v258 = vld [vmem:[#allocation5 + $0xe0] sm:$0xf]
    %v259 = vld [vmem:[#allocation5 + $0xe4] sm:$0xf]
    %v260 = vld [vmem:[#allocation5 + $0xe8] sm:$0xf]
    %v261 = vld [vmem:[#allocation5 + $0xec] sm:$0xf]
    %v262 = vld [vmem:[#allocation5 + $0xf0] sm:$0xf]
    %v263 = vld [vmem:[#allocation5 + $0xf4] sm:$0xf]
    %v264 = vld [vmem:[#allocation5 + $0xf8] sm:$0xf]
    %v265 = vld [vmem:[#allocation5 + $0xfc] sm:$0xf]
    %v266 = vld [vmem:[#allocation5 + $0x100] sm:$0xf]
    %v267 = vld [vmem:[#allocation5 + $0x104] sm:$0xf]
    %v268 = vld [vmem:[#allocation5 + $0x108] sm:$0xf]
    %v269 = vld [vmem:[#allocation5 + $0x10c] sm:$0xf]
    %v270 = vld [vmem:[#allocation5 + $0x110] sm:$0xf]
    %v271 = vld [vmem:[#allocation5 + $0x114] sm:$0xf]
    %v272 = vld [vmem:[#allocation5 + $0x118] sm:$0xf]
    %v273 = vld [vmem:[#allocation5 + $0x11c] sm:$0xf]
    %v274 = vld [vmem:[#allocation5 + $0x120] sm:$0xf]
    %v275 = vld [vmem:[#allocation5 + $0x124] sm:$0xf]
    %v276 = vld [vmem:[#allocation5 + $0x128] sm:$0xf]
    %v277 = vld [vmem:[#allocation5 + $0x12c] sm:$0xf]
    %v278 = vld [vmem:[#allocation5 + $0x130] sm:$0xf]
    %v279 = vld [vmem:[#allocation5 + $0x134] sm:$0xf]
    %v280 = vld [vmem:[#allocation5 + $0x138] sm:$0xf]
    %v281 = vld [vmem:[#allocation5 + $0x13c] sm:$0xf]
    %v282 = vld [vmem:[#allocation5 + $0x140] sm:$0xf]
    %v283 = vld [vmem:[#allocation5 + $0x144] sm:$0xf]
    %v284 = vld [vmem:[#allocation5 + $0x148] sm:$0xf]
    %v285 = vld [vmem:[#allocation5 + $0x14c] sm:$0xf]
    %v286 = vld [vmem:[#allocation5 + $0x150] sm:$0xf]
    %v287 = vld [vmem:[#allocation5 + $0x154] sm:$0xf]
    %v288 = vld [vmem:[#allocation5 + $0x158] sm:$0xf]
    %v289 = vld [vmem:[#allocation5 + $0x15c] sm:$0xf]
    %v290 = vld [vmem:[#allocation5 + $0x160] sm:$0xf]
    %v291 = vld [vmem:[#allocation5 + $0x164] sm:$0xf]
    %v292 = vld [vmem:[#allocation5 + $0x168] sm:$0xf]
    %v293 = vld [vmem:[#allocation5 + $0x16c] sm:$0xf]
    %v294 = vld [vmem:[#allocation5 + $0x170] sm:$0xf]
    %v295 = vld [vmem:[#allocation5 + $0x174] sm:$0xf]
    %v296 = vld [vmem:[#allocation5 + $0x178] sm:$0xf]
    %v297 = vld [vmem:[#allocation5 + $0x17c] sm:$0xf]
    %v298 = vld [vmem:[%s2] sm:$0x1]
    %v300 = vlaneseq
    %v301 = vshrl.u32 %v300, 7
    %v302 = vsub.s32 0, %v301
    %v303 = vrot.slane %v298, %v302
    %v401 = vunpack.c.l.b16 %v202
    %v402 = vunpack.c.l.b16 %v203
    %v403 = vunpack.c.l.b16 %v204
    %v404 = vunpack.c.l.b16 %v205
    %v405 = vunpack.c.l.b16 %v206
    %v406 = vunpack.c.l.b16 %v207
    %v407 = vunpack.c.l.b16 %v208
    %v408 = vunpack.c.l.b16 %v209
    %v409 = vunpack.c.l.b16 %v210
    %v410 = vunpack.c.l.b16 %v211
    %v411 = vunpack.c.l.b16 %v212
    %v412 = vunpack.c.l.b16 %v213
    %v413 = vunpack.c.l.b16 %v214
    %v414 = vunpack.c.l.b16 %v215
    %v415 = vunpack.c.l.b16 %v216
    %v416 = vunpack.c.l.b16 %v217
    %v417 = vunpack.c.l.b16 %v218
    %v418 = vunpack.c.l.b16 %v219
    %v419 = vunpack.c.l.b16 %v220
    %v420 = vunpack.c.l.b16 %v221
    %v421 = vunpack.c.l.b16 %v222
    %v422 = vunpack.c.l.b16 %v223
    %v423 = vunpack.c.l.b16 %v224
    %v424 = vunpack.c.l.b16 %v225
    %v425 = vunpack.c.l.b16 %v226
    %v426 = vunpack.c.l.b16 %v227
    %v427 = vunpack.c.l.b16 %v228
    %v428 = vunpack.c.l.b16 %v229
    %v429 = vunpack.c.l.b16 %v230
    %v430 = vunpack.c.l.b16 %v231
    %v431 = vunpack.c.l.b16 %v232
    %v432 = vunpack.c.l.b16 %v233
    %v433 = vunpack.c.l.b16 %v234
    %v434 = vunpack.c.l.b16 %v235
    %v435 = vunpack.c.l.b16 %v236
    %v436 = vunpack.c.l.b16 %v237
    %v437 = vunpack.c.l.b16 %v238
    %v438 = vunpack.c.l.b16 %v239
    %v439 = vunpack.c.l.b16 %v240
    %v440 = vunpack.c.l.b16 %v241
    %v441 = vunpack.c.l.b16 %v242
    %v442 = vunpack.c.l.b16 %v243
    %v443 = vunpack.c.l.b16 %v244
    %v444 = vunpack.c.l.b16 %v245
    %v445 = vunpack.c.l.b16 %v246
    %v446 = vunpack.c.l.b16 %v247
    %v447 = vunpack.c.l.b16 %v248
    %v448 = vunpack.c.l.b16 %v249
    %v449 = vunpack.c.l.b16 %v250
    %v450 = vunpack.c.l.b16 %v251
    %v451 = vunpack.c.l.b16 %v252
    %v452 = vunpack.c.l.b16 %v253
    %v453 = vunpack.c.l.b16 %v254
    %v454 = vunpack.c.l.b16 %v255
    %v455 = vunpack.c.l.b16 %v256
    %v456 = vunpack.c.l.b16 %v257
    %v457 = vunpack.c.l.b16 %v258
    %v458 = vunpack.c.l.b16 %v259
    %v459 = vunpack.c.l.b16 %v260
    %v460 = vunpack.c.l.b16 %v261
    %v461 = vunpack.c.l.b16 %v262
    %v462 = vunpack.c.l.b16 %v263
    %v463 = vunpack.c.l.b16 %v264
    %v464 = vunpack.c.l.b16 %v265
    %v465 = vunpack.c.l.b16 %v266
    %v466 = vunpack.c.l.b16 %v267
    %v467 = vunpack.c.l.b16 %v268
    %v468 = vunpack.c.l.b16 %v269
    %v469 = vunpack.c.l.b16 %v270
    %v470 = vunpack.c.l.b16 %v271
    %v471 = vunpack.c.l.b16 %v272
    %v472 = vunpack.c.l.b16 %v273
    %v473 = vunpack.c.l.b16 %v274
    %v474 = vunpack.c.l.b16 %v275
    %v475 = vunpack.c.l.b16 %v276
    %v476 = vunpack.c.l.b16 %v277
    %v477 = vunpack.c.l.b16 %v278
    %v478 = vunpack.c.l.b16 %v279
    %v479 = vunpack.c.l.b16 %v280
    %v480 = vunpack.c.l.b16 %v281
    %v481 = vunpack.c.l.b16 %v282
    %v482 = vunpack.c.l.b16 %v283
    %v483 = vunpack.c.l.b16 %v284
    %v484 = vunpack.c.l.b16 %v285
    %v485 = vunpack.c.l.b16 %v286
    %v486 = vunpack.c.l.b16 %v287
    %v487 = vunpack.c.l.b16 %v288
    %v488 = vunpack.c.l.b16 %v289
    %v489 = vunpack.c.l.b16 %v290
    %v490 = vunpack.c.l.b16 %v291
    %v491 = vunpack.c.l.b16 %v292
    %v492 = vunpack.c.l.b16 %v293
    %v493 = vunpack.c.l.b16 %v294
    %v494 = vunpack.c.l.b16 %v295
    %v495 = vunpack.c.l.b16 %v296
    %v496 = vunpack.c.l.b16 %v297
    %v497 = vpack.c.b16 %v402, %v401
    %v498 = vpack.c.b16 %v404, %v403
    %v499 = vpack.c.b16 %v406, %v405
    %v500 = vpack.c.b16 %v408, %v407
    %v501 = vpack.c.b16 %v410, %v409
    %v502 = vpack.c.b16 %v412, %v411
    %v503 = vpack.c.b16 %v414, %v413
    %v504 = vpack.c.b16 %v416, %v415
    %v505 = vpack.c.b16 %v418, %v417
    %v506 = vpack.c.b16 %v420, %v419
    %v507 = vpack.c.b16 %v422, %v421
    %v508 = vpack.c.b16 %v424, %v423
    %v509 = vpack.c.b16 %v426, %v425
    %v510 = vpack.c.b16 %v428, %v427
    %v511 = vpack.c.b16 %v430, %v429
    %v512 = vpack.c.b16 %v432, %v431
    %v513 = vpack.c.b16 %v434, %v433
    %v514 = vpack.c.b16 %v436, %v435
    %v515 = vpack.c.b16 %v438, %v437
    %v516 = vpack.c.b16 %v440, %v439
    %v517 = vpack.c.b16 %v442, %v441
    %v518 = vpack.c.b16 %v444, %v443
    %v519 = vpack.c.b16 %v446, %v445
    %v520 = vpack.c.b16 %v448, %v447
    %v521 = vpack.c.b16 %v450, %v449
    %v522 = vpack.c.b16 %v452, %v451
    %v523 = vpack.c.b16 %v454, %v453
    %v524 = vpack.c.b16 %v456, %v455
    %v525 = vpack.c.b16 %v458, %v457
    %v526 = vpack.c.b16 %v460, %v459
    %v527 = vpack.c.b16 %v462, %v461
    %v528 = vpack.c.b16 %v464, %v463
    %v529 = vpack.c.b16 %v466, %v465
    %v530 = vpack.c.b16 %v468, %v467
    %v531 = vpack.c.b16 %v470, %v469
    %v532 = vpack.c.b16 %v472, %v471
    %v533 = vpack.c.b16 %v474, %v473
    %v534 = vpack.c.b16 %v476, %v475
    %v535 = vpack.c.b16 %v478, %v477
    %v536 = vpack.c.b16 %v480, %v479
    %v537 = vpack.c.b16 %v482, %v481
    %v538 = vpack.c.b16 %v484, %v483
    %v539 = vpack.c.b16 %v486, %v485
    %v540 = vpack.c.b16 %v488, %v487
    %v541 = vpack.c.b16 %v490, %v489
    %v542 = vpack.c.b16 %v492, %v491
    %v543 = vpack.c.b16 %v494, %v493
    %v544 = vpack.c.b16 %v496, %v495
    %593 = vmatprep.subr.bf16.mxu0 0
    %594 = vmatpush1.bf16.msra.mxu0 %v504
    %595 = vmatprep.subr.bf16.mxu0 0
    %596 = vmatpush1.bf16.msra.mxu0 %v503
    %597 = vmatprep.subr.bf16.mxu0 0
    %598 = vmatpush1.bf16.msra.mxu0 %v502
    %599 = vmatprep.subr.bf16.mxu0 0
    %600 = vmatpush1.bf16.msra.mxu0 %v501
    %601 = vmatprep.subr.bf16.mxu0 0
    %602 = vmatpush1.bf16.msra.mxu0 %v500
    %603 = vmatprep.subr.bf16.mxu0 0
    %604 = vmatpush1.bf16.msra.mxu0 %v499
    %605 = vmatprep.subr.bf16.mxu0 0
    %606 = vmatpush1.bf16.msra.mxu0 %v498
    %607 = vmatprep.subr.bf16.mxu0 0
    %608 = vmatpush1.bf16.msra.mxu0 %v497
    %609 = vmatprep.subr.bf16.mxu0 0
    %610 = vmatpush2.bf16.msra.mxu0 %v512
    %611 = vmatprep.subr.bf16.mxu0 0
    %612 = vmatpush2.bf16.msra.mxu0 %v511
    %613 = vmatprep.subr.bf16.mxu0 0
    %614 = vmatpush2.bf16.msra.mxu0 %v510
    %615 = vmatprep.subr.bf16.mxu0 0
    %616 = vmatpush2.bf16.msra.mxu0 %v509
    %617 = vmatprep.subr.bf16.mxu0 0
    %618 = vmatpush2.bf16.msra.mxu0 %v508
    %619 = vmatprep.subr.bf16.mxu0 0
    %620 = vmatpush2.bf16.msra.mxu0 %v507
    %621 = vmatprep.subr.bf16.mxu0 0
    %622 = vmatpush2.bf16.msra.mxu0 %v506
    %623 = vmatprep.subr.bf16.mxu0 0
    %624 = vmatpush2.bf16.msra.mxu0 %v505
    %625 = vmatprep.mubr.bf16.mxu0 %v197
    %626 = vmatmul.mubr.bf16.gmra.mxu0 %v196
    %v627 = vpop.f32.mrf.mxu0
    %v628 = vadd.f32 %v303, %v627
    %v629 = vpop.f32.mrf.mxu0
    %v630 = vpop.f32.mrf.mxu0
    %v631 = vadd.f32 %v303, %v630
    %v632 = vpop.f32.mrf.mxu0
    %633 = vdwg.mxu0
    %634 = vmatprep.subr.bf16.mxu0 0
    %635 = vmatpush1.bf16.msra.mxu0 %v520
    %636 = vmatprep.subr.bf16.mxu0 0
    %637 = vmatpush1.bf16.msra.mxu0 %v519
    %638 = vmatprep.subr.bf16.mxu0 0
    %639 = vmatpush1.bf16.msra.mxu0 %v518
    %640 = vmatprep.subr.bf16.mxu0 0
    %641 = vmatpush1.bf16.msra.mxu0 %v517
    %642 = vmatprep.subr.bf16.mxu0 0
    %643 = vmatpush1.bf16.msra.mxu0 %v516
    %644 = vmatprep.subr.bf16.mxu0 0
    %645 = vmatpush1.bf16.msra.mxu0 %v515
    %646 = vmatprep.subr.bf16.mxu0 0
    %647 = vmatpush1.bf16.msra.mxu0 %v514
    %648 = vmatprep.subr.bf16.mxu0 0
    %649 = vmatpush1.bf16.msra.mxu0 %v513
    %650 = vmatprep.subr.bf16.mxu0 0
    %651 = vmatpush2.bf16.msra.mxu0 %v528
    %652 = vmatprep.subr.bf16.mxu0 0
    %653 = vmatpush2.bf16.msra.mxu0 %v527
    %654 = vmatprep.subr.bf16.mxu0 0
    %655 = vmatpush2.bf16.msra.mxu0 %v526
    %656 = vmatprep.subr.bf16.mxu0 0
    %657 = vmatpush2.bf16.msra.mxu0 %v525
    %658 = vmatprep.subr.bf16.mxu0 0
    %659 = vmatpush2.bf16.msra.mxu0 %v524
    %660 = vmatprep.subr.bf16.mxu0 0
    %661 = vmatpush2.bf16.msra.mxu0 %v523
    %662 = vmatprep.subr.bf16.mxu0 0
    %663 = vmatpush2.bf16.msra.mxu0 %v522
    %664 = vmatprep.subr.bf16.mxu0 0
    %665 = vmatpush2.bf16.msra.mxu0 %v521
    %666 = vmatprep.mubr.bf16.mxu0 %v199
    %667 = vmatmul.mubr.bf16.gmra.mxu0 %v198
    %v668 = vpop.f32.mrf.mxu0
    %v669 = vadd.f32 %v628, %v668
    %v670 = vpop.f32.mrf.mxu0
    %v671 = vpop.f32.mrf.mxu0
    %v672 = vadd.f32 %v631, %v671
    %v673 = vpop.f32.mrf.mxu0
    %674 = vdwg.mxu0
    %675 = vmatprep.subr.bf16.mxu0 0
    %676 = vmatpush1.bf16.msra.mxu0 %v536
    %677 = vmatprep.subr.bf16.mxu0 0
    %678 = vmatpush1.bf16.msra.mxu0 %v535
    %679 = vmatprep.subr.bf16.mxu0 0
    %680 = vmatpush1.bf16.msra.mxu0 %v534
    %681 = vmatprep.subr.bf16.mxu0 0
    %682 = vmatpush1.bf16.msra.mxu0 %v533
    %683 = vmatprep.subr.bf16.mxu0 0
    %684 = vmatpush1.bf16.msra.mxu0 %v532
    %685 = vmatprep.subr.bf16.mxu0 0
    %686 = vmatpush1.bf16.msra.mxu0 %v531
    %687 = vmatprep.subr.bf16.mxu0 0
    %688 = vmatpush1.bf16.msra.mxu0 %v530
    %689 = vmatprep.subr.bf16.mxu0 0
    %690 = vmatpush1.bf16.msra.mxu0 %v529
    %691 = vmatprep.subr.bf16.mxu0 0
    %692 = vmatpush2.bf16.msra.mxu0 %v544
    %693 = vmatprep.subr.bf16.mxu0 0
    %694 = vmatpush2.bf16.msra.mxu0 %v543
    %695 = vmatprep.subr.bf16.mxu0 0
    %696 = vmatpush2.bf16.msra.mxu0 %v542
    %697 = vmatprep.subr.bf16.mxu0 0
    %698 = vmatpush2.bf16.msra.mxu0 %v541
    %699 = vmatprep.subr.bf16.mxu0 0
    %700 = vmatpush2.bf16.msra.mxu0 %v540
    %701 = vmatprep.subr.bf16.mxu0 0
    %702 = vmatpush2.bf16.msra.mxu0 %v539
    %703 = vmatprep.subr.bf16.mxu0 0
    %704 = vmatpush2.bf16.msra.mxu0 %v538
    %705 = vmatprep.subr.bf16.mxu0 0
    %706 = vmatpush2.bf16.msra.mxu0 %v537
    %707 = vmatprep.mubr.bf16.mxu0 %v201
    %708 = vmatmul.mubr.bf16.gmra.mxu0 %v200
    %v709 = vpop.f32.mrf.mxu0
    %v710 = vadd.f32 %v669, %v709
    %v711 = vpop.f32.mrf.mxu0
    %v712 = vpop.f32.mrf.mxu0
    %v713 = vadd.f32 %v672, %v712
    %v714 = vpop.f32.mrf.mxu0
    %715 = vdwg.mxu0
    %716 = vmax.xlane.f32.xlu0 %v710
    %v717 = vpop.xlane.xlu0 %716
    %718 = vmax.xlane.f32.xlu0 %v713
    %v719 = vpop.xlane.xlu0 %718
    %v720 = vsub.f32 %v710, %v717
    %v721 = vsub.f32 %v713, %v719
    %v722 = vmul.f32 %v720, 1.442695
    %v723 = vpow.pop %v722
    %v724 = vmul.f32 %v721, 1.442695
    %v725 = vpow.pop %v724
    %726 = vadd.xlane.f32.xlu0 %v723
    %v727 = vpop.xlane.xlu0 %726
    %728 = vadd.xlane.f32.xlu0 %v725
    %v729 = vpop.xlane.xlu0 %728
    %v730 = vrcp.pop %v727
    %v731 = vmul.f32 %v723, %v730
    %v732 = vrcp.pop %v729
    %v733 = vmul.f32 %v725, %v732
    %v734 = vpack.c.bf16 %v733, %v731
    %v736 = vcombine.high %v734, %v734
    %v738 = vunpack.c.l.s4 1966171168
    %v739 = vunpack.c.0.s8 %v738
    %v740 = vlaneseq
    %v741 = vshrl.u32 %v740, 7
    %v742 = vsub.s32 %v739, %v741
    %v743 = vrot.slane %v734, %v742
    %v745 = vunpack.c.l.s4 1966171168
    %v746 = vunpack.c.0.s8 %v745
    %v747 = vlaneseq
    %v748 = vshrl.u32 %v747, 7
    %v749 = vsub.s32 %v746, %v748
    %v750 = vrot.slane %v736, %v749
    %v751 = vcombine.high %v743, %v743
    %v752 = vcombine.high %v750, %v750
    %v754 = vunpack.c.l.s4 1966171168
    %v755 = vunpack.c.0.s8 %v754
    %v756 = vlaneseq
    %v757 = vshrl.u32 %v756, 7
    %v758 = vsub.s32 %v755, %v757
    %v759 = vrot.slane %v743, %v758
    %v761 = vunpack.c.l.s4 1966171168
    %v762 = vunpack.c.0.s8 %v761
    %v763 = vlaneseq
    %v764 = vshrl.u32 %v763, 7
    %v765 = vsub.s32 %v762, %v764
    %v766 = vrot.slane %v750, %v765
    %v768 = vunpack.c.l.s4 1966171168
    %v769 = vunpack.c.0.s8 %v768
    %v770 = vlaneseq
    %v771 = vshrl.u32 %v770, 7
    %v772 = vsub.s32 %v769, %v771
    %v773 = vrot.slane %v751, %v772
    %v775 = vunpack.c.l.s4 1966171168
    %v776 = vunpack.c.0.s8 %v775
    %v777 = vlaneseq
    %v778 = vshrl.u32 %v777, 7
    %v779 = vsub.s32 %v776, %v778
    %v780 = vrot.slane %v752, %v779
    %v781 = vcombine.high %v759, %v759
    %v782 = vcombine.high %v766, %v766
    %v783 = vcombine.high %v773, %v773
    %v784 = vcombine.high %v780, %v780
    %793 = vst [vmem:[#allocation7] sm:$0x1] %v759
    %794 = vst [vmem:[#allocation7 + $0x1] sm:$0x1] %v773
    %795 = vst [vmem:[#allocation7 + $0x2] sm:$0x1] %v781
    %796 = vst [vmem:[#allocation7 + $0x3] sm:$0x1] %v783
    %797 = vst [vmem:[#allocation7 + $0x4] sm:$0x1] %v766
    %798 = vst [vmem:[#allocation7 + $0x5] sm:$0x1] %v780
    %799 = vst [vmem:[#allocation7 + $0x6] sm:$0x1] %v782
    %800 = vst [vmem:[#allocation7 + $0x7] sm:$0x1] %v784
    // Predicated region
    $region22: #{tpu_custom_call.1} parent=1 // pred_check
      _
    $region23: #{tpu_custom_call.1} parent=1 // pred_check_branch
      %802 = sbr.rel (0) target = $region25
    $region24: #{tpu_custom_call.1} parent=1 // pred_region
      %s804 = ssub.s32 128, 16
      %805 = vsyncadd [#allocation4], %s804
      %s806 = sshll.u32 [#allocation7], 4
      %s807 = int_to_ptr.vmem [resolvable:$true] %s806
      %812 = dma.vmem_to_hbm [thread:$0]  %s807, 16, %s3, [#allocation4], 16, 16, 1
    $region25: #{tpu_custom_call.1} parent=1 // pred_fallthru
      _
    // Predicated region
    $region26: #{tpu_custom_call.1} parent=1 // pred_check
      _
    $region27: #{tpu_custom_call.1} parent=1 // pred_check_branch
      %814 = sbr.rel (0) target = $region29
    $region28: #{tpu_custom_call.1} parent=1 // pred_region
      %815 = dma.done [#allocation4], 128
    $region29: #{tpu_custom_call.1} parent=1 // pred_fallthru
      _
    %816 = vsyncpa [#allocation3], 1
    %817 = vsyncpa [#allocation6], 1
    %818 = vsyncpa [#allocation4], 1

</llo_original>
